<compile_context>
chip_gen: v5e
topology: v5e:2x2
jax: 0.10.0
libtpu: 0.0.40
codegen_flags: <defaults>
</compile_context>

<pallas_src>
import math

import jax
import jax.numpy as jnp
from jax import lax
from jax.experimental import pallas as pl
from jax.experimental.pallas import tpu as pltpu

LANES = 128


def _round_up(x, m):
    return ((x + m - 1) // m) * m


def _is_tracer(x):
    try:
        return isinstance(x, jax.core.Tracer)
    except Exception:
        return False


def _device_traits():
    """Best-effort TPU-generation detection with conservative fallbacks."""
    kind = ""
    try:
        kind = jax.devices()[0].device_kind.lower()
    except Exception:
        pass
    is_v5e = ("v5e" in kind) or ("v5 lite" in kind) or ("v5litepod" in kind)
    is_v6 = "v6" in kind
    is_v7 = "v7" in kind
    is_megacore = ("v4" in kind) or ("v5p" in kind) or ("v5 p" in kind)

    if is_v6 or is_v7:
        target_rows = 4096   # 2 MiB/input/block f32; double-buffered well under 32 MiB
    else:
        target_rows = 2048   # v5e (and unknown) scoped-VMEM default is 16 MiB

    dual_tc = is_v7 or is_megacore     # chips where a parallel leading axis buys a 2nd TC
    core_parallel = is_v7              # v7x needs CORE_PARALLEL to actually split cores
    _ = is_v5e
    return target_rows, dual_tc, core_parallel


def _make_msle_kernel(tile_rows, tiles_per_split, rows_valid, total_tiles,
                      needs_mask, has_min, two_axis):
    def kernel(*refs):
        if has_min:
            p_ref, t_ref, sum_ref, min_ref = refs
        else:
            p_ref, t_ref, sum_ref = refs
            min_ref = None

        if two_axis:
            s = pl.program_id(0)        # per-TensorCore split
            i = pl.program_id(1)        # sequential reduction axis (last)
            tile_idx = s * tiles_per_split + i
        else:
            i = pl.program_id(0)
            tile_idx = i

        @pl.when(i == 0)
        def _init():
            sum_ref[...] = jnp.zeros_like(sum_ref)
            if has_min:
                min_ref[...] = jnp.zeros_like(min_ref)

        p = p_ref[...].astype(jnp.float32)
        t = t_ref[...].astype(jnp.float32)

        def accumulate(pv, tv):
            # Two-log form: matches the <128-element tail path and the torch
            # reference; EUP has slack in this HBM-bound kernel.
            d = jnp.log1p(pv) - jnp.log1p(tv)
            # Fold (tile_rows, 128) down to one vreg (8, 128) with pure VPU adds
            # (the reshape splits the sublane axis exactly on vreg boundaries).
            dd = (d * d).reshape(tile_rows // 8, 8, LANES).sum(axis=0)
            sum_ref[...] += dd[None]
            if has_min:
                mn = jnp.minimum(pv, tv).reshape(tile_rows // 8, 8, LANES).min(axis=0)
                min_ref[...] = jnp.minimum(min_ref[...], mn[None])

        if needs_mask:
            is_last = tile_idx == (total_tiles - 1)

            @pl.when(is_last)
            def _boundary_tile():
                # Mask padded rows BEFORE the log so the ragged last block
                # contributes exactly zero (log1p(0) == 0) and padding garbage
                # never reaches the transcendental.
                row = tile_idx * tile_rows + lax.broadcasted_iota(
                    jnp.int32, (tile_rows, LANES), 0)
                valid = row < rows_valid
                accumulate(jnp.where(valid, p, 0.0), jnp.where(valid, t, 0.0))

            @pl.when(jnp.logical_not(is_last))
            def _interior_tile():
                accumulate(p, t)
        else:
            accumulate(p, t)

    return kernel


def msle_loss(y_pred: jax.Array, y_true: jax.Array, *, check_nonneg: bool = True) -> jax.Array:
    """Mean Squared Logarithmic Error, matching torch MSLELoss.forward semantics."""
    assert y_pred.shape == y_true.shape, "y_pred and y_true must have the same shape"
    n_elems = math.prod(y_pred.shape)
    assert n_elems > 0, "inputs must be non-empty"

    # Only build the running-min output when it can actually raise (eager mode).
    compute_min = bool(check_nonneg) and not (_is_tracer(y_pred) or _is_tracer(y_true))

    p_flat = jnp.ravel(y_pred)
    t_flat = jnp.ravel(y_true)

    rows_full = n_elems // LANES
    use_pallas = rows_full >= 8          # tiny inputs go straight to the JAX path
    n_main = rows_full * LANES if use_pallas else 0

    sq_sum = jnp.float32(0.0)
    min_val = jnp.float32(0.0)

    if use_pallas:
        target_rows, dual_tc, core_parallel = _device_traits()

        # Sublane alignment for the block row dim (8 / 16 / 32 for 4/2/1-byte dtypes).
        itemsize = max(jnp.dtype(y_pred.dtype).itemsize, jnp.dtype(y_true.dtype).itemsize)
        sub = {4: 8, 2: 16, 1: 32}.get(itemsize, 8)
        tile_rows = min(_round_up(target_rows, sub), _round_up(rows_full, sub))

        total_tiles = pl.cdiv(rows_full, tile_rows)
        # Split across TensorCores only when it costs nothing: two-TC chip and an
        # even tile count (no duplicated clamped-tile HBM re-reads).
        nsplit = 2 if (dual_tc and total_tiles >= 2 and total_tiles % 2 == 0) else 1
        tiles_per_split = total_tiles // nsplit
        needs_mask = total_tiles * tile_rows != rows_full
        two_axis = nsplit > 1

        if two_axis:
            grid = (nsplit, tiles_per_split)
            in_map = lambda s, i: (s * tiles_per_split + i, 0)
            out_map = lambda s, i: (s, 0, 0)
            core_par_sem = getattr(pltpu, "CORE_PARALLEL", None)
            arb_sem = getattr(pltpu, "ARBITRARY", "arbitrary")
            if core_parallel and core_par_sem is not None:
                dims = (core_par_sem, arb_sem)
            else:
                dims = ("parallel", "arbitrary")
        else:
            grid = (total_tiles,)
            in_map = lambda i: (i, 0)
            out_map = lambda i: (0, 0, 0)
            dims = ("arbitrary",)

        # Free reshapes (no copy): flat prefix -> lane-dense (rows_full, 128) slab,
        # kept in the caller's dtype (cast to f32 happens inside the kernel).
        p_main = p_flat[:n_main].reshape(rows_full, LANES)
        t_main = t_flat[:n_main].reshape(rows_full, LANES)

        kernel = _make_msle_kernel(tile_rows, tiles_per_split, rows_full, total_tiles,
                                   needs_mask, compute_min, two_axis)

        out_shapes = [jax.ShapeDtypeStruct((nsplit, 8, LANES), jnp.float32)]
        out_specs = [pl.BlockSpec((1, 8, LANES), out_map)]
        if compute_min:
            out_shapes.append(jax.ShapeDtypeStruct((nsplit, 8, LANES), jnp.float32))
            out_specs.append(pl.BlockSpec((1, 8, LANES), out_map))

        results = pl.pallas_call(
            kernel,
            out_shape=tuple(out_shapes),
            grid_spec=pltpu.PrefetchScalarGridSpec(
                num_scalar_prefetch=0,
                grid=grid,
                in_specs=[
                    pl.BlockSpec((tile_rows, LANES), in_map),
                    pl.BlockSpec((tile_rows, LANES), in_map),
                ],
                out_specs=tuple(out_specs),
            ),
            compiler_params=pltpu.CompilerParams(dimension_semantics=dims),
        )(p_main, t_main)

        sq_sum = jnp.sum(results[0], dtype=jnp.float32)
        if compute_min:
            min_val = jnp.min(results[1])

    if n_main < n_elems:
        # Remainder (<128 elems, or tiny inputs entirely): cheaper in plain JAX
        # than padding a full copy.
        p_tail = p_flat[n_main:].astype(jnp.float32)
        t_tail = t_flat[n_main:].astype(jnp.float32)
        d_tail = jnp.log1p(p_tail) - jnp.log1p(t_tail)
        sq_sum = sq_sum + jnp.sum(d_tail * d_tail)
        if compute_min:
            min_val = jnp.minimum(min_val, jnp.minimum(jnp.min(p_tail), jnp.min(t_tail)))

    if compute_min:
        # Eager-mode parity with the PyTorch module (ValueError on negatives).
        try:
            is_neg = bool(min_val < 0)
        except jax.errors.ConcretizationTypeError:
            is_neg = False
        if is_neg:
            raise ValueError("Input tensors for MSLE must be non-negative.")
    # TODO(synk): the non-negativity ValueError cannot be raised under jit
    # (data-dependent error); it is enforced only in eager mode.

    return (sq_sum / jnp.float32(n_elems)).reshape(())


if __name__ == "__main__":
    key = jax.random.PRNGKey(0)
    k1, k2 = jax.random.split(key)
    shape = (2, 4, 16, 16)  # NCHW, small synthetic shapes

    # Non-negative inputs, as MSLE requires.
    y_pred = jax.random.uniform(k1, shape, dtype=jnp.float32, minval=0.0, maxval=5.0)
    y_true = jax.random.uniform(k2, shape, dtype=jnp.float32, minval=0.0, maxval=5.0)

    loss = msle_loss(y_pred, y_true)
    jax.block_until_ready(loss)

    # Reference check in plain JAX.
    ref = jnp.mean((jnp.log1p(y_pred) - jnp.log1p(y_true)) ** 2)
    assert jnp.allclose(loss, ref, rtol=1e-5, atol=1e-6), (loss, ref)

    # Also works under jit (non-negativity check / min path dropped while tracing).
    loss_jit = jax.jit(msle_loss)(y_pred, y_true)
    jax.block_until_ready(loss_jit)
    assert jnp.allclose(loss_jit, ref, rtol=1e-5, atol=1e-6), (loss_jit, ref)

    print("KERNEL_OK")
</pallas_src>

<mosaic_0001>
module attributes {stable_mosaic.version = 11 : i64} {
  func.func @kernel(%arg0: i32, %arg1: memref<16x128xf32, #tpu.memory_space<vmem>>, %arg2: memref<16x128xf32, #tpu.memory_space<vmem>>, %arg3: memref<1x8x128xf32, #tpu.memory_space<vmem>>, %arg4: memref<1x8x128xf32, #tpu.memory_space<vmem>>) attributes {dimension_semantics = [#tpu.dimension_semantics<arbitrary>], iteration_bounds = array<i64: 1>, scalar_prefetch = 0 : i64, scratch_operands = 0 : i64, tpu.core_type = #tpu.core_type<tc>, window_params = [{transform_indices = @transform_0, window_bounds = array<i64: 16, 128>}, {transform_indices = @transform_1, window_bounds = array<i64: 16, 128>}, {pipeline_mode = #tpu.pipeline_mode<synchronous>, transform_indices = @transform_2, window_bounds = array<i64: 1, 8, 128>}, {pipeline_mode = #tpu.pipeline_mode<synchronous>, transform_indices = @transform_3, window_bounds = array<i64: 1, 8, 128>}]} {
    %c0_i32 = arith.constant 0 : i32
    %0 = arith.cmpi eq, %arg0, %c0_i32 : i32
    %1 = arith.extui %0 : i1 to i32
    %c0_i32_0 = arith.constant 0 : i32
    %2 = arith.cmpi ne, %1, %c0_i32_0 : i32
    scf.if %2 {
      %cst_17 = arith.constant 0.000000e+00 : f32
      %22 = vector.broadcast %cst_17 : f32 to vector<1x8x128xf32>
      %c0_18 = arith.constant 0 : index
      %c0_19 = arith.constant 0 : index
      %c0_20 = arith.constant 0 : index
      %23 = vector.load %arg3[%c0_18, %c0_19, %c0_20] : memref<1x8x128xf32, #tpu.memory_space<vmem>>, vector<1x8x128xf32>
      tpu.vector_store %arg3[%c0_18, %c0_19, %c0_20], %22 {strides = array<i32>} : memref<1x8x128xf32, #tpu.memory_space<vmem>>, vector<1x8x128xf32>,
      %cst_21 = arith.constant 0.000000e+00 : f32
      %24 = vector.broadcast %cst_21 : f32 to vector<1x8x128xf32>
      %c0_22 = arith.constant 0 : index
      %c0_23 = arith.constant 0 : index
      %c0_24 = arith.constant 0 : index
      %25 = vector.load %arg4[%c0_22, %c0_23, %c0_24] : memref<1x8x128xf32, #tpu.memory_space<vmem>>, vector<1x8x128xf32>
      tpu.vector_store %arg4[%c0_22, %c0_23, %c0_24], %24 {strides = array<i32>} : memref<1x8x128xf32, #tpu.memory_space<vmem>>, vector<1x8x128xf32>,
    } else {
    }
    %c0 = arith.constant 0 : index
    %c0_1 = arith.constant 0 : index
    %3 = vector.load %arg1[%c0, %c0_1] : memref<16x128xf32, #tpu.memory_space<vmem>>, vector<16x128xf32>
    %c0_2 = arith.constant 0 : index
    %c0_3 = arith.constant 0 : index
    %4 = vector.load %arg2[%c0_2, %c0_3] : memref<16x128xf32, #tpu.memory_space<vmem>>, vector<16x128xf32>
    %5 = math.log1p %3 : vector<16x128xf32>
    %6 = math.log1p %4 : vector<16x128xf32>
    %7 = arith.subf %5, %6 : vector<16x128xf32>
    %8 = arith.mulf %7, %7 : vector<16x128xf32>
    %9 = vector.shape_cast %8 : vector<16x128xf32> to vector<2x8x128xf32>
    %cst = arith.constant dense<0.000000e+00> : vector<8x128xf32>
    %10 = vector.multi_reduction <add>, %9, %cst [0] : vector<2x8x128xf32> to vector<8x128xf32>
    %c0_4 = arith.constant 0 : index
    %c0_5 = arith.constant 0 : index
    %c0_6 = arith.constant 0 : index
    %11 = vector.load %arg3[%c0_4, %c0_5, %c0_6] : memref<1x8x128xf32, #tpu.memory_space<vmem>>, vector<1x8x128xf32>
    %12 = vector.shape_cast %10 : vector<8x128xf32> to vector<1x8x128xf32>
    %13 = arith.addf %11, %12 : vector<1x8x128xf32>
    %c0_7 = arith.constant 0 : index
    %c0_8 = arith.constant 0 : index
    %c0_9 = arith.constant 0 : index
    %14 = vector.load %arg3[%c0_7, %c0_8, %c0_9] : memref<1x8x128xf32, #tpu.memory_space<vmem>>, vector<1x8x128xf32>
    tpu.vector_store %arg3[%c0_7, %c0_8, %c0_9], %13 {strides = array<i32>} : memref<1x8x128xf32, #tpu.memory_space<vmem>>, vector<1x8x128xf32>,
    %15 = arith.minimumf %3, %4 : vector<16x128xf32>
    %16 = vector.shape_cast %15 : vector<16x128xf32> to vector<2x8x128xf32>
    %cst_10 = arith.constant dense<0x7F800000> : vector<8x128xf32>
    %17 = vector.multi_reduction <minimumf>, %16, %cst_10 [0] : vector<2x8x128xf32> to vector<8x128xf32>
    %c0_11 = arith.constant 0 : index
    %c0_12 = arith.constant 0 : index
    %c0_13 = arith.constant 0 : index
    %18 = vector.load %arg4[%c0_11, %c0_12, %c0_13] : memref<1x8x128xf32, #tpu.memory_space<vmem>>, vector<1x8x128xf32>
    %19 = vector.shape_cast %17 : vector<8x128xf32> to vector<1x8x128xf32>
    %20 = arith.minimumf %18, %19 : vector<1x8x128xf32>
    %c0_14 = arith.constant 0 : index
    %c0_15 = arith.constant 0 : index
    %c0_16 = arith.constant 0 : index
    %21 = vector.load %arg4[%c0_14, %c0_15, %c0_16] : memref<1x8x128xf32, #tpu.memory_space<vmem>>, vector<1x8x128xf32>
    tpu.vector_store %arg4[%c0_14, %c0_15, %c0_16], %20 {strides = array<i32>} : memref<1x8x128xf32, #tpu.memory_space<vmem>>, vector<1x8x128xf32>,
    return
  }
  func.func @transform_0(%arg0: i32) -> (i32, i32) {
    %c0_i32 = arith.constant 0 : i32
    %c0_i32_0 = arith.constant 0 : i32
    return %arg0, %c0_i32 : i32, i32
  }
  func.func @transform_1(%arg0: i32) -> (i32, i32) {
    %c0_i32 = arith.constant 0 : i32
    %c0_i32_0 = arith.constant 0 : i32
    return %arg0, %c0_i32 : i32, i32
  }
  func.func @transform_2(%arg0: i32) -> (i32, i32, i32) {
    %c0_i32 = arith.constant 0 : i32
    %c0_i32_0 = arith.constant 0 : i32
    %c0_i32_1 = arith.constant 0 : i32
    %c0_i32_2 = arith.constant 0 : i32
    return %c0_i32, %c0_i32_0, %c0_i32_1 : i32, i32, i32
  }
  func.func @transform_3(%arg0: i32) -> (i32, i32, i32) {
    %c0_i32 = arith.constant 0 : i32
    %c0_i32_0 = arith.constant 0 : i32
    %c0_i32_1 = arith.constant 0 : i32
    %c0_i32_2 = arith.constant 0 : i32
    return %c0_i32, %c0_i32_0, %c0_i32_1 : i32, i32, i32
  }
}

</mosaic_0001>

<llo_original>
// kernel: tpu_custom_call.1
$region0: #{tpu_custom_call.1}
  #allocation0 [shape = 'u32[]', space=smem, size = 0x4, offset = 0x4, fixed_abs, tag = 'smem constant byte address 0x4 - core index']
  #allocation1 [shape = 'u32[72,128]{1,0:T(1,128)}', space=vmem, size = 0x9000, scoped, tag = 'internal scratch']
  %s0 = inlined_call_operand.hbm [shape: f32[16,128], index: 0, kind: input, shape index: {}]
  %s1 = inlined_call_operand.hbm [shape: f32[16,128], index: 1, kind: input, shape index: {}]
  %s2 = inlined_call_operand.hbm [shape: f32[1,8,128], index: 2, kind: output, shape index: {0}]
  %s3 = inlined_call_operand.hbm [shape: f32[1,8,128], index: 3, kind: output, shape index: {1}]
  %4 = xla_tuple %s2, %s3
  %s5 = sld [smem:[#allocation0]]
  $region38: #{tpu_custom_call.1} parent=0
    _
  %s7 = ssub.s32 1, %s5
  %s8 = scalar_select 0, %s7, %s5
  $region1: #{tpu_custom_call.1} parent=0
    #allocation2 [shape = 'u8[8192]{0}', space=vmem, size = 0x2000, scoped, tag = 'input window, operand 0, single buffered']
    #allocation3 [shape = 's32[1]{0}', space=sflag, size = 0x4, scoped, tag = 'scoped memory for tpu_custom_call.1']
    #allocation4 [shape = 's32[1]{0}', space=sflag, size = 0x4, scoped, tag = 'scoped memory for tpu_custom_call.1']
    #allocation5 [shape = 'u8[8192]{0}', space=vmem, size = 0x2000, scoped, tag = 'input window, operand 1, single buffered']
    #allocation6 [shape = 's32[1]{0}', space=sflag, size = 0x4, scoped, tag = 'scoped memory for tpu_custom_call.1']
    #allocation7 [shape = 'u8[4096]{0}', space=vmem, size = 0x1000, scoped, tag = 'output window, operand 0, single buffered']
    #allocation8 [shape = 'u8[4096]{0}', space=vmem, size = 0x1000, scoped, tag = 'output window, operand 1, single buffered']
    #allocation9 [shape = 's32[1]{0}', space=sflag, size = 0x4, scoped, tag = 'scoped memory for tpu_custom_call.1']
    %9 = vsyncpa [#allocation3], 0
    %10 = vsyncpa [#allocation6], 0
    %11 = vsyncpa [#allocation4], 0
    %12 = vsyncpa [#allocation9], 0
    // Predicated region
    $region2: #{tpu_custom_call.1} parent=1 // pred_check
      _
    $region3: #{tpu_custom_call.1} parent=1 // pred_check_branch
      %14 = sbr.rel (0) target = $region5
    $region4: #{tpu_custom_call.1} parent=1 // pred_region
      %16 = vsyncadd [#allocation3], 0
      %s17 = sshll.u32 %s0, 4
      %s18 = int_to_ptr.hbm [resolvable:$true] %s17
      %s19 = sshll.u32 [#allocation2], 4
      %s20 = int_to_ptr.vmem [resolvable:$true] %s19
      %25 = dma.hbm_to_vmem [thread:$0]  %s18, 256, %s20, [#allocation3], 128, 128, 8
    $region5: #{tpu_custom_call.1} parent=1 // pred_fallthru
      _
    // Predicated region
    $region6: #{tpu_custom_call.1} parent=1 // pred_check
      _
    $region7: #{tpu_custom_call.1} parent=1 // pred_check_branch
      %27 = sbr.rel (0) target = $region9
    $region8: #{tpu_custom_call.1} parent=1 // pred_region
      %29 = vsyncadd [#allocation6], 0
      %s30 = sshll.u32 %s1, 4
      %s31 = int_to_ptr.hbm [resolvable:$true] %s30
      %s32 = sshll.u32 [#allocation5], 4
      %s33 = int_to_ptr.vmem [resolvable:$true] %s32
      %38 = dma.hbm_to_vmem [thread:$0]  %s31, 256, %s33, [#allocation6], 128, 128, 8
    $region9: #{tpu_custom_call.1} parent=1 // pred_fallthru
      _
    // Predicated region
    $region10: #{tpu_custom_call.1} parent=1 // pred_check
      _
    $region11: #{tpu_custom_call.1} parent=1 // pred_check_branch
      %40 = sbr.rel (0) target = $region13
    $region12: #{tpu_custom_call.1} parent=1 // pred_region
      %42 = dma.done [#allocation3], 256
    $region13: #{tpu_custom_call.1} parent=1 // pred_fallthru
      _
    // Predicated region
    $region14: #{tpu_custom_call.1} parent=1 // pred_check
      _
    $region15: #{tpu_custom_call.1} parent=1 // pred_check_branch
      %44 = sbr.rel (0) target = $region17
    $region16: #{tpu_custom_call.1} parent=1 // pred_region
      %46 = dma.done [#allocation6], 256
    $region17: #{tpu_custom_call.1} parent=1 // pred_fallthru
      _
    %p47 = scmp.eq.s32.totalorder 0, 0
    // Predicated region
    $region18: #{tpu_custom_call.1} parent=1 // pred_check
      %p48 = pneg %p47
    $region19: #{tpu_custom_call.1} parent=1 // pred_check_branch
      %50 = sbr.rel (%p48) target = $region21
    $region20: #{tpu_custom_call.1} parent=1 // pred_region
      %51 = vst [vmem:[#allocation7] sm:$0xff] 0.0
      %52 = vst [vmem:[#allocation8] sm:$0xff] 0.0
    $region21: #{tpu_custom_call.1} parent=1 // pred_fallthru
      _
    %v53 = vld [vmem:[#allocation2] sm:$0xff]
    %v54 = vld [vmem:[#allocation2 + $0x8] sm:$0xff]
    %v55 = vld [vmem:[#allocation5] sm:$0xff]
    %v56 = vld [vmem:[#allocation5 + $0x8] sm:$0xff]
    %v57 = vadd.f32 %v53, 1.0
    %v58 = vlog2.pop %v57
    %v59 = vmul.f32 %v58, 0.6931472
    %v60 = vmul.f32 -0.5, %v53
    %v61 = vadd.f32 %v60, 1.0
    %v62 = vmul.f32 %v61, %v53
    %v63 = vand.u32 2147483647, %v53
    %vm64 = vcmp.lt.f32.partialorder %v63, 0.0004427343
    %v65 = vsel %vm64, %v62, %v59
    %v66 = vadd.f32 %v54, 1.0
    %v67 = vlog2.pop %v66
    %v68 = vmul.f32 %v67, 0.6931472
    %v69 = vmul.f32 -0.5, %v54
    %v70 = vadd.f32 %v69, 1.0
    %v71 = vmul.f32 %v70, %v54
    %v72 = vand.u32 2147483647, %v54
    %vm73 = vcmp.lt.f32.partialorder %v72, 0.0004427343
    %v74 = vsel %vm73, %v71, %v68
    %v75 = vadd.f32 %v55, 1.0
    %v76 = vlog2.pop %v75
    %v77 = vmul.f32 %v76, 0.6931472
    %v78 = vmul.f32 -0.5, %v55
    %v79 = vadd.f32 %v78, 1.0
    %v80 = vmul.f32 %v79, %v55
    %v81 = vand.u32 2147483647, %v55
    %vm82 = vcmp.lt.f32.partialorder %v81, 0.0004427343
    %v83 = vsel %vm82, %v80, %v77
    %v84 = vadd.f32 %v56, 1.0
    %v85 = vlog2.pop %v84
    %v86 = vmul.f32 %v85, 0.6931472
    %v87 = vmul.f32 -0.5, %v56
    %v88 = vadd.f32 %v87, 1.0
    %v89 = vmul.f32 %v88, %v56
    %v90 = vand.u32 2147483647, %v56
    %vm91 = vcmp.lt.f32.partialorder %v90, 0.0004427343
    %v92 = vsel %vm91, %v89, %v86
    %v93 = vsub.f32 %v65, %v83
    %v94 = vsub.f32 %v74, %v92
    %v95 = vmul.f32 %v93, %v93
    %v96 = vmul.f32 %v94, %v94
    %v97 = vadd.f32 %v95, %v96
    %v98 = vld [vmem:[#allocation7] sm:$0xff]
    %v99 = vadd.f32 %v98, %v97
    %100 = vst [vmem:[#allocation7] sm:$0xff] %v99
    %v101 = vmin.f32 %v53, %v55
    %v102 = vmin.f32 %v54, %v56
    %v103 = vmin.f32 %v101, %v102
    %v104 = vld [vmem:[#allocation8] sm:$0xff]
    %v105 = vmin.f32 %v104, %v103
    %106 = vst [vmem:[#allocation8] sm:$0xff] %v105
    // Predicated region
    $region22: #{tpu_custom_call.1} parent=1 // pred_check
      _
    $region23: #{tpu_custom_call.1} parent=1 // pred_check_branch
      %108 = sbr.rel (0) target = $region25
    $region24: #{tpu_custom_call.1} parent=1 // pred_region
      %110 = vsyncadd [#allocation4], 0
      %s112 = sshll.u32 [#allocation7], 4
      %s113 = int_to_ptr.vmem [resolvable:$true] %s112
      %s114 = sshll.u32 %s2, 4
      %s115 = int_to_ptr.hbm [resolvable:$true] %s114
      %117 = dma.vmem_to_hbm [thread:$0]  %s113, 128, %s115, [#allocation4]
    $region25: #{tpu_custom_call.1} parent=1 // pred_fallthru
      _
    // Predicated region
    $region26: #{tpu_custom_call.1} parent=1 // pred_check
      _
    $region27: #{tpu_custom_call.1} parent=1 // pred_check_branch
      %119 = sbr.rel (0) target = $region29
    $region28: #{tpu_custom_call.1} parent=1 // pred_region
      %121 = vsyncadd [#allocation9], 0
      %s123 = sshll.u32 [#allocation8], 4
      %s124 = int_to_ptr.vmem [resolvable:$true] %s123
      %s125 = sshll.u32 %s3, 4
      %s126 = int_to_ptr.hbm [resolvable:$true] %s125
      %128 = dma.vmem_to_hbm [thread:$0]  %s124, 128, %s126, [#allocation9]
    $region29: #{tpu_custom_call.1} parent=1 // pred_fallthru
      _
    // Predicated region
    $region30: #{tpu_custom_call.1} parent=1 // pred_check
      _
    $region31: #{tpu_custom_call.1} parent=1 // pred_check_branch
      %130 = sbr.rel (0) target = $region33
    $region32: #{tpu_custom_call.1} parent=1 // pred_region
      %132 = dma.done [#allocation4], 128
    $region33: #{tpu_custom_call.1} parent=1 // pred_fallthru
      _
    // Predicated region
    $region34: #{tpu_custom_call.1} parent=1 // pred_check
      _
    $region35: #{tpu_custom_call.1} parent=1 // pred_check_branch
      %134 = sbr.rel (0) target = $region37
    $region36: #{tpu_custom_call.1} parent=1 // pred_region
      %136 = dma.done [#allocation9], 128
    $region37: #{tpu_custom_call.1} parent=1 // pred_fallthru
      _
    %137 = vsyncpa [#allocation3], 1
    %138 = vsyncpa [#allocation6], 1
    %139 = vsyncpa [#allocation4], 1
    %140 = vsyncpa [#allocation9], 1

</llo_original>
